<compile_context>
chip_gen: v6e
topology: v6e:2x2x1
jax: 0.10.0
libtpu: 0.0.40
codegen_flags: <defaults>
</compile_context>

<pallas_src>
import functools

import jax
import jax.numpy as jnp
from jax.experimental import pallas as pl
from jax.experimental.pallas import tpu as pltpu


def _sublane_tree_max(v):
    """(R, F) -> (8, F) via a log-tree of vreg-wise maxes (pure VPU, no XLU).

    R must be a power of two >= 8 (static), so every slice offset stays
    sublane-aligned.
    """
    rows = v.shape[0]
    while rows > 8:
        half = rows // 2
        v = jnp.maximum(v[:half, :], v[half:, :])
        rows = half
    return v


def global_max_pool(x, batch, num_graphs, *, tile_n=2048):
    """x: [N, F] float, batch: [N] sorted int graph ids -> [num_graphs, F]."""
    N, F = x.shape
    out_dtype = x.dtype

    # ---- static tiling (host-side Python ints, jit-safe) -------------------
    tile_n = max(8, int(tile_n))
    tile_n = 1 << (tile_n.bit_length() - 1)                  # power of two
    tile_n = min(tile_n, max(8, pl.next_power_of_2(N)))      # don't dwarf N
    num_tiles = pl.cdiv(N, tile_n)

    n_cores = 2                                              # v7x 2-TC split
    tiles_per_core = pl.cdiv(num_tiles, n_cores)

    # ---- scalar-prefetch tables (device-side, no host sync) ----------------
    batch_i32 = batch.astype(jnp.int32)
    # CSR row pointers of the sorted batch vector.
    row_ptr = jnp.searchsorted(
        batch_i32, jnp.arange(num_graphs + 1, dtype=jnp.int32)
    ).astype(jnp.int32)
    # First / last graph id touched by each node tile.
    t_starts = jnp.arange(num_tiles, dtype=jnp.int32) * tile_n
    tile_first = batch_i32[t_starts]
    tile_last = batch_i32[jnp.minimum(t_starts + tile_n - 1, N - 1)]

    def tile_idx(c, t):
        # Global node-tile index, clamped so the ragged last core half just
        # re-processes the final tile (max is idempotent).
        return jnp.minimum(c * tiles_per_core + t, num_tiles - 1)

    def x_index_map(c, t, row_ptr_ref, tf_ref, tl_ref):
        return (tile_idx(c, t), 0)

    def out_index_map(c, t, row_ptr_ref, tf_ref, tl_ref):
        return (c, 0, 0)

    def kernel(row_ptr_ref, tf_ref, tl_ref, x_ref, o_ref, acc_ref):
        c = pl.program_id(0)
        t = pl.program_id(1)

        @pl.when(t == 0)
        def _init():
            acc_ref[...] = jnp.full(acc_ref.shape, -jnp.inf, acc_ref.dtype)

        gt = tile_idx(c, t)
        base = gt * tile_n
        g_lo = tf_ref[gt]
        g_hi = tl_ref[gt]

        # Fast path: every row of this tile belongs to one graph and none of
        # the rows are padding -> unmasked max, no iota/compare/select.
        full_tile = (g_lo == g_hi) & (base + tile_n <= N)

        @pl.when(full_tile)
        def _fast():
            part = _sublane_tree_max(x_ref[...])
            acc_ref[g_lo] = jnp.maximum(acc_ref[g_lo], part)

        @pl.when(jnp.logical_not(full_tile))
        def _slow():
            rows = base + jax.lax.broadcasted_iota(jnp.int32, (tile_n, 1), 0)
            xv = x_ref[...]

            def body(g, carry):
                start = row_ptr_ref[g]
                stop = row_ptr_ref[g + 1]
                # Rows outside [start, stop) — including garbage rows of a
                # ragged trailing tile (index >= N >= stop) — become -inf.
                mask = (rows >= start) & (rows < stop)
                masked = jnp.where(mask, xv, -jnp.inf)
                part = _sublane_tree_max(masked)
                acc_ref[g] = jnp.maximum(acc_ref[g], part)
                return carry

            jax.lax.fori_loop(g_lo, g_hi + 1, body, 0)

        @pl.when(t == pl.num_programs(1) - 1)
        def _finish():
            # Single cross-sublane 8->1 reduce per graph, once per core.
            o_ref[0] = acc_ref[...].max(axis=1).astype(o_ref.dtype)

    partial = pl.pallas_call(
        kernel,
        out_shape=jax.ShapeDtypeStruct((n_cores, num_graphs, F), out_dtype),
        grid_spec=pltpu.PrefetchScalarGridSpec(
            num_scalar_prefetch=3,
            grid=(n_cores, tiles_per_core),
            in_specs=[pl.BlockSpec((tile_n, F), x_index_map)],
            out_specs=pl.BlockSpec((1, num_graphs, F), out_index_map),
            scratch_shapes=[pltpu.VMEM((num_graphs, 8, F), out_dtype)],
        ),
        compiler_params=pltpu.CompilerParams(
            dimension_semantics=("parallel", "arbitrary"),
            vmem_limit_bytes=32 * 1024 * 1024,
        ),
    )(row_ptr, tile_first, tile_last, x)

    # Combine the two per-core partial maxima (tiny: 2 x B x F elementwise).
    # TODO(synk): graphs with zero nodes return -inf rows (matches
    # jax.ops.segment_max for floats; PyG assumes no empty graphs). Only
    # floating-point feature dtypes are supported (-inf identity).
    return jnp.max(partial, axis=0)


if __name__ == "__main__":
    key = jax.random.PRNGKey(0)
    num_graphs = 4
    sizes = (200, 57, 131, 124)            # ragged graphs, boundaries off-tile
    N = sum(sizes)                          # 512 nodes
    F = 96                                  # non-multiple-of-128 feature width

    x = jax.random.normal(key, (N, F), dtype=jnp.float32)
    batch = jnp.concatenate(
        [jnp.full((s,), g, dtype=jnp.int32) for g, s in enumerate(sizes)])

    ref = jax.ops.segment_max(x, batch, num_segments=num_graphs)

    # Small tiles: exercises fast path, multi-graph boundary tiles, and a
    # graph that spans both core halves.
    pool_small = jax.jit(functools.partial(
        global_max_pool, num_graphs=num_graphs, tile_n=128))
    out_small = jax.block_until_ready(pool_small(x, batch))
    assert out_small.shape == (num_graphs, F)
    assert jnp.allclose(out_small, ref), "mismatch (tile_n=128) vs segment_max"

    # Default (large) tiles: single tile covering all graphs, clamp path.
    pool_big = jax.jit(functools.partial(global_max_pool, num_graphs=num_graphs))
    out_big = jax.block_until_ready(pool_big(x, batch))
    assert jnp.allclose(out_big, ref), "mismatch (default tile) vs segment_max"

    print("KERNEL_OK")
</pallas_src>

<mosaic_0001>
module attributes {stable_mosaic.version = 11 : i64} {
  func.func @kernel(%arg0: i32, %arg1: i32, %arg2: memref<5xi32, #tpu.memory_space<smem>>, %arg3: memref<4xi32, #tpu.memory_space<smem>>, %arg4: memref<4xi32, #tpu.memory_space<smem>>, %arg5: memref<128x96xf32, #tpu.memory_space<vmem>>, %arg6: memref<1x4x96xf32, #tpu.memory_space<vmem>>, %arg7: memref<4x8x96xf32, #tpu.memory_space<vmem>>) attributes {dimension_semantics = [#tpu.dimension_semantics<parallel>, #tpu.dimension_semantics<arbitrary>], iteration_bounds = array<i64: 2, 2>, scalar_prefetch = 3 : i64, scratch_operands = 1 : i64, tpu.core_type = #tpu.core_type<tc>, window_params = [{transform_indices = @transform_0, window_bounds = array<i64: 128, 96>}, {transform_indices = @transform_1, window_bounds = array<i64: 1, 4, 96>}]} {
    %c0_i32 = arith.constant 0 : i32
    %0 = arith.cmpi eq, %arg1, %c0_i32 : i32
    %1 = arith.extui %0 : i1 to i32
    %c0_i32_0 = arith.constant 0 : i32
    %2 = arith.cmpi ne, %1, %c0_i32_0 : i32
    scf.if %2 {
      %cst = arith.constant 0xFF800000 : f32
      %23 = vector.broadcast %cst : f32 to vector<4x8x96xf32>
      %c0 = arith.constant 0 : index
      %c0_5 = arith.constant 0 : index
      %c0_6 = arith.constant 0 : index
      %24 = vector.load %arg7[%c0, %c0_5, %c0_6] : memref<4x8x96xf32, #tpu.memory_space<vmem>>, vector<4x8x96xf32>
      tpu.vector_store %arg7[%c0, %c0_5, %c0_6], %23 {strides = array<i32>} : memref<4x8x96xf32, #tpu.memory_space<vmem>>, vector<4x8x96xf32>,
    } else {
    }
    %c2_i32 = arith.constant 2 : i32
    %3 = arith.muli %arg0, %c2_i32 : i32
    %4 = arith.addi %3, %arg1 : i32
    %c3_i32 = arith.constant 3 : i32
    %5 = arith.minsi %4, %c3_i32 : i32
    %c128_i32 = arith.constant 128 : i32
    %6 = arith.muli %5, %c128_i32 : i32
    %7 = arith.index_cast %5 : i32 to index
    %8 = memref.load %arg3[%7] : memref<4xi32, #tpu.memory_space<smem>>
    %9 = arith.index_cast %5 : i32 to index
    %10 = memref.load %arg4[%9] : memref<4xi32, #tpu.memory_space<smem>>
    %11 = arith.cmpi eq, %8, %10 : i32
    %c128_i32_1 = arith.constant 128 : i32
    %12 = arith.addi %6, %c128_i32_1 : i32
    %c512_i32 = arith.constant 512 : i32
    %13 = arith.cmpi sle, %12, %c512_i32 : i32
    %14 = arith.andi %11, %13 : i1
    %15 = arith.extui %14 : i1 to i32
    %c0_i32_2 = arith.constant 0 : i32
    %16 = arith.cmpi ne, %15, %c0_i32_2 : i32
    scf.if %16 {
      %c0 = arith.constant 0 : index
      %c0_5 = arith.constant 0 : index
      %23 = vector.load %arg5[%c0, %c0_5] : memref<128x96xf32, #tpu.memory_space<vmem>>, vector<128x96xf32>
      %24 = vector.extract_strided_slice %23 {offsets = [0, 0], sizes = [64, 96], strides = [1, 1]} : vector<128x96xf32> to vector<64x96xf32>
      %25 = vector.extract_strided_slice %23 {offsets = [64, 0], sizes = [64, 96], strides = [1, 1]} : vector<128x96xf32> to vector<64x96xf32>
      %26 = arith.maximumf %24, %25 : vector<64x96xf32>
      %27 = vector.extract_strided_slice %26 {offsets = [0, 0], sizes = [32, 96], strides = [1, 1]} : vector<64x96xf32> to vector<32x96xf32>
      %28 = vector.extract_strided_slice %26 {offsets = [32, 0], sizes = [32, 96], strides = [1, 1]} : vector<64x96xf32> to vector<32x96xf32>
      %29 = arith.maximumf %27, %28 : vector<32x96xf32>
      %30 = vector.extract_strided_slice %29 {offsets = [0, 0], sizes = [16, 96], strides = [1, 1]} : vector<32x96xf32> to vector<16x96xf32>
      %31 = vector.extract_strided_slice %29 {offsets = [16, 0], sizes = [16, 96], strides = [1, 1]} : vector<32x96xf32> to vector<16x96xf32>
      %32 = arith.maximumf %30, %31 : vector<16x96xf32>
      %33 = vector.extract_strided_slice %32 {offsets = [0, 0], sizes = [8, 96], strides = [1, 1]} : vector<16x96xf32> to vector<8x96xf32>
      %34 = vector.extract_strided_slice %32 {offsets = [8, 0], sizes = [8, 96], strides = [1, 1]} : vector<16x96xf32> to vector<8x96xf32>
      %35 = arith.maximumf %33, %34 : vector<8x96xf32>
      %36 = arith.index_cast %8 : i32 to index
      %c0_6 = arith.constant 0 : index
      %c0_7 = arith.constant 0 : index
      %37 = vector.load %arg7[%36, %c0_6, %c0_7] : memref<4x8x96xf32, #tpu.memory_space<vmem>>, vector<1x8x96xf32>
      %38 = vector.shape_cast %37 : vector<1x8x96xf32> to vector<8x96xf32>
      %39 = arith.maximumf %38, %35 : vector<8x96xf32>
      %40 = arith.index_cast %8 : i32 to index
      %c0_8 = arith.constant 0 : index
      %c0_9 = arith.constant 0 : index
      %41 = vector.load %arg7[%40, %c0_8, %c0_9] : memref<4x8x96xf32, #tpu.memory_space<vmem>>, vector<1x8x96xf32>
      %42 = vector.shape_cast %41 : vector<1x8x96xf32> to vector<8x96xf32>
      %43 = vector.shape_cast %39 : vector<8x96xf32> to vector<1x8x96xf32>
      tpu.vector_store %arg7[%40, %c0_8, %c0_9], %43 {strides = array<i32>} : memref<4x8x96xf32, #tpu.memory_space<vmem>>, vector<1x8x96xf32>,
    } else {
    }
    %true = arith.constant true
    %17 = arith.xori %14, %true : i1
    %18 = arith.extui %17 : i1 to i32
    %c0_i32_3 = arith.constant 0 : i32
    %19 = arith.cmpi ne, %18, %c0_i32_3 : i32
    scf.if %19 {
      %23 = tpu.iota {dimensions = array<i32: 0>} : vector<128x1xi32>
      %24 = vector.broadcast %6 : i32 to vector<128x1xi32>
      %25 = arith.addi %24, %23 : vector<128x1xi32>
      %c0 = arith.constant 0 : index
      %c0_5 = arith.constant 0 : index
      %26 = vector.load %arg5[%c0, %c0_5] : memref<128x96xf32, #tpu.memory_space<vmem>>, vector<128x96xf32>
      %c1_i32_6 = arith.constant 1 : i32
      %27 = arith.addi %10, %c1_i32_6 : i32
      %c0_i32_7 = arith.constant 0 : i32
      %28 = arith.subi %27, %8 : i32
      %29 = arith.addi %8, %28 : i32
      %c1_i32_8 = arith.constant 1 : i32
      scf.for %arg8 = %8 to %29 step %c1_i32_8  : i32 {
        %30 = arith.index_cast %arg8 : i32 to index
        %31 = memref.load %arg2[%30] : memref<5xi32, #tpu.memory_space<smem>>
        %c1_i32_9 = arith.constant 1 : i32
        %32 = arith.addi %arg8, %c1_i32_9 : i32
        %33 = arith.index_cast %32 : i32 to index
        %34 = memref.load %arg2[%33] : memref<5xi32, #tpu.memory_space<smem>>
        %35 = vector.broadcast %31 : i32 to vector<128x1xi32>
        %36 = arith.cmpi sge, %25, %35 : vector<128x1xi32>
        %37 = vector.broadcast %34 : i32 to vector<128x1xi32>
        %38 = arith.cmpi slt, %25, %37 : vector<128x1xi32>
        %39 = arith.andi %36, %38 : vector<128x1xi1>
        %cst = arith.constant 0xFF800000 : f32
        %40 = vector.shape_cast %39 : vector<128x1xi1> to vector<128x1xi1>
        %41 = vector.broadcast %40 : vector<128x1xi1> to vector<128x96xi1>
        %42 = vector.broadcast %cst : f32 to vector<128x96xf32>
        %43 = arith.select %41, %26, %42 : vector<128x96xi1>, vector<128x96xf32>
        %44 = vector.extract_strided_slice %43 {offsets = [0, 0], sizes = [64, 96], strides = [1, 1]} : vector<128x96xf32> to vector<64x96xf32>
        %45 = vector.extract_strided_slice %43 {offsets = [64, 0], sizes = [64, 96], strides = [1, 1]} : vector<128x96xf32> to vector<64x96xf32>
        %46 = arith.maximumf %44, %45 : vector<64x96xf32>
        %47 = vector.extract_strided_slice %46 {offsets = [0, 0], sizes = [32, 96], strides = [1, 1]} : vector<64x96xf32> to vector<32x96xf32>
        %48 = vector.extract_strided_slice %46 {offsets = [32, 0], sizes = [32, 96], strides = [1, 1]} : vector<64x96xf32> to vector<32x96xf32>
        %49 = arith.maximumf %47, %48 : vector<32x96xf32>
        %50 = vector.extract_strided_slice %49 {offsets = [0, 0], sizes = [16, 96], strides = [1, 1]} : vector<32x96xf32> to vector<16x96xf32>
        %51 = vector.extract_strided_slice %49 {offsets = [16, 0], sizes = [16, 96], strides = [1, 1]} : vector<32x96xf32> to vector<16x96xf32>
        %52 = arith.maximumf %50, %51 : vector<16x96xf32>
        %53 = vector.extract_strided_slice %52 {offsets = [0, 0], sizes = [8, 96], strides = [1, 1]} : vector<16x96xf32> to vector<8x96xf32>
        %54 = vector.extract_strided_slice %52 {offsets = [8, 0], sizes = [8, 96], strides = [1, 1]} : vector<16x96xf32> to vector<8x96xf32>
        %55 = arith.maximumf %53, %54 : vector<8x96xf32>
        %56 = arith.index_cast %arg8 : i32 to index
        %c0_10 = arith.constant 0 : index
        %c0_11 = arith.constant 0 : index
        %57 = vector.load %arg7[%56, %c0_10, %c0_11] : memref<4x8x96xf32, #tpu.memory_space<vmem>>, vector<1x8x96xf32>
        %58 = vector.shape_cast %57 : vector<1x8x96xf32> to vector<8x96xf32>
        %59 = arith.maximumf %58, %55 : vector<8x96xf32>
        %60 = arith.index_cast %arg8 : i32 to index
        %c0_12 = arith.constant 0 : index
        %c0_13 = arith.constant 0 : index
        %61 = vector.load %arg7[%60, %c0_12, %c0_13] : memref<4x8x96xf32, #tpu.memory_space<vmem>>, vector<1x8x96xf32>
        %62 = vector.shape_cast %61 : vector<1x8x96xf32> to vector<8x96xf32>
        %63 = vector.shape_cast %59 : vector<8x96xf32> to vector<1x8x96xf32>
        tpu.vector_store %arg7[%60, %c0_12, %c0_13], %63 {strides = array<i32>} : memref<4x8x96xf32, #tpu.memory_space<vmem>>, vector<1x8x96xf32>,
      }
    } else {
    }
    %c1_i32 = arith.constant 1 : i32
    %20 = arith.cmpi eq, %arg1, %c1_i32 : i32
    %21 = arith.extui %20 : i1 to i32
    %c0_i32_4 = arith.constant 0 : i32
    %22 = arith.cmpi ne, %21, %c0_i32_4 : i32
    scf.if %22 {
      %c0 = arith.constant 0 : index
      %c0_5 = arith.constant 0 : index
      %c0_6 = arith.constant 0 : index
      %23 = vector.load %arg7[%c0, %c0_5, %c0_6] : memref<4x8x96xf32, #tpu.memory_space<vmem>>, vector<4x8x96xf32>
      %cst = arith.constant dense<0xFF800000> : vector<4x96xf32>
      %24 = vector.multi_reduction <maximumf>, %23, %cst [1] : vector<4x8x96xf32> to vector<4x96xf32>
      %c0_7 = arith.constant 0 : index
      %c0_8 = arith.constant 0 : index
      %c0_9 = arith.constant 0 : index
      %25 = vector.load %arg6[%c0_7, %c0_8, %c0_9] : memref<1x4x96xf32, #tpu.memory_space<vmem>>, vector<1x4x96xf32>
      %26 = vector.shape_cast %25 : vector<1x4x96xf32> to vector<4x96xf32>
      %27 = vector.shape_cast %24 : vector<4x96xf32> to vector<1x4x96xf32>
      tpu.vector_store %arg6[%c0_7, %c0_8, %c0_9], %27 {strides = array<i32>} : memref<1x4x96xf32, #tpu.memory_space<vmem>>, vector<1x4x96xf32>,
    } else {
    }
    return
  }
  func.func @transform_0(%arg0: i32, %arg1: i32, %arg2: memref<5xi32, #tpu.memory_space<smem>>, %arg3: memref<4xi32, #tpu.memory_space<smem>>, %arg4: memref<4xi32, #tpu.memory_space<smem>>) -> (i32, i32) {
    %c2_i32 = arith.constant 2 : i32
    %0 = arith.muli %arg0, %c2_i32 : i32
    %1 = arith.addi %0, %arg1 : i32
    %c3_i32 = arith.constant 3 : i32
    %2 = arith.minsi %1, %c3_i32 : i32
    %c0_i32 = arith.constant 0 : i32
    %c0_i32_0 = arith.constant 0 : i32
    return %2, %c0_i32 : i32, i32
  }
  func.func @transform_1(%arg0: i32, %arg1: i32, %arg2: memref<5xi32, #tpu.memory_space<smem>>, %arg3: memref<4xi32, #tpu.memory_space<smem>>, %arg4: memref<4xi32, #tpu.memory_space<smem>>) -> (i32, i32, i32) {
    %c0_i32 = arith.constant 0 : i32
    %c0_i32_0 = arith.constant 0 : i32
    %c0_i32_1 = arith.constant 0 : i32
    return %arg0, %c0_i32, %c0_i32_0 : i32, i32, i32
  }
}

</mosaic_0001>

<llo_original>
// kernel: custom-call.1
$region0: #{custom-call.1}
  %s0 = inlined_call_operand.vmem [shape: u32[5], index: 0, kind: output, shape index: {}]

// kernel: global_max_pool.1
$region0: #{global_max_pool.1}
  #allocation0 [shape = 'u32[]', space=smem, size = 0x4, offset = 0x4, fixed_abs, tag = 'smem constant byte address 0x4 - core index']
  #allocation1 [shape = 'u32[144,128]{1,0:T(1,128)}', space=vmem, size = 0x12000, scoped, tag = 'internal scratch']
  #allocation2 [shape = 'f32[4,8,96]{2,1,0:T(8,128)}', space=vmem, size = 0x4000, scoped, tag = 'scratch operand']
  #allocation3 [shape = 's32[1]{0}', space=sflag, size = 0x4, scoped, tag = 'scoped memory for global_max_pool.1']
  #allocation4 [shape = 'u8[512]{0}', space=smem, size = 0x200, scoped, tag = 'prefetched SMEM operand 0']
  #allocation5 [shape = 'u8[512]{0}', space=smem, size = 0x200, scoped, tag = 'prefetched SMEM operand 1']
  #allocation6 [shape = 'u8[512]{0}', space=smem, size = 0x200, scoped, tag = 'prefetched SMEM operand 2']
  %s0 = inlined_call_operand.vmem [shape: s32[5], index: 0, kind: input, shape index: {}]
  %s1 = inlined_call_operand.vmem [shape: s32[4], index: 1, kind: input, shape index: {}]
  %s2 = inlined_call_operand.vmem [shape: s32[4], index: 2, kind: input, shape index: {}]
  %s3 = inlined_call_operand.vmem [shape: f32[512,96], index: 3, kind: input, shape index: {}]
  %s4 = inlined_call_operand.vmem [shape: f32[2,4,96], index: 4, kind: output, shape index: {}]
  %s5 = sld [smem:[#allocation0]]
  $region60: #{global_max_pool.1} parent=0
    _
  %s7 = ssub.s32 1, %s5
  %s8 = scalar_select 0, %s7, %s5
  %s9 = sshll.u32 %s0, 4
  %s10 = int_to_ptr.vmem [resolvable:$true] %s9
  %12 = dma.vmem_to_smem %s10, 16, [#allocation4], [#allocation3]
  %s13 = sshll.u32 %s1, 4
  %s14 = int_to_ptr.vmem [resolvable:$true] %s13
  %16 = dma.vmem_to_smem %s14, 16, [#allocation5], [#allocation3]
  %s17 = sshll.u32 %s2, 4
  %s18 = int_to_ptr.vmem [resolvable:$true] %s17
  %20 = dma.vmem_to_smem %s18, 16, [#allocation6], [#allocation3]
  %21 = dma.done [#allocation3], 48
  %22 = sfence
  loop: start=0, step=1, limit=6
  $region2: #{global_max_pool.1} parent=0 // loop_pre_header
    _
  $region3: #{global_max_pool.1} parent=0 // loop_header
    %s24 = sphi 0, %s28
    %p25 = scmp.ge.s32.totalorder %s24, 6
    %s31 = sphi 0, %s43
    %s32 = sphi 0, %s39
    %s33 = sphi 0, %s31
    %s34 = sphi 0, %s32
    %s35 = sphi 0, %s33
    %s36 = sphi 0, %s34
    %s54 = sphi 0, %s56
    %s57 = sphi 0, %s54
    %s58 = sphi 0, %s57
    %s74 = sphi 0, %s58
    %s80 = sphi 0, %s82
    %s83 = sphi 0, %s80
    %s84 = sphi 0, %s83
    %s100 = sphi 0, %s84
  $region4: #{global_max_pool.1} parent=0 // loop_header_branch
    %27 = sbr.rel (%p25) target = $region8
  $region5: #{global_max_pool.1} parent=0 // loop_body
    %s29 = ssub.s32 %s24, 1
    %s30 = ssub.s32 %s24, 2
    %s37 = sadd.s32 1, %s32
    %p38 = scmp.ge.s32.totalorder %s37, 2
    %s39 = scalar_select %p38, 0, %s37
    %s40 = sadd.s32 1, %s31
    %s41 = scalar_select %p38, %s40, %s31
    %p42 = scmp.ge.s32.totalorder %s41, 2
    %s43 = scalar_select %p42, 0, %s41
    %s44 = smul.u32 %s31, 2
    %s45 = sadd.s32 %s44, %s32
    %p46 = scmp.lt.s32.totalorder %s45, 3
    %s47 = scalar_select %p46, %s45, 3
    %s48 = smul.u32 %s43, 2
    %s49 = sadd.s32 %s48, %s39
    %p50 = scmp.lt.s32.totalorder %s49, 3
    %s51 = scalar_select %p50, %s49, 3
    %s52 = ssub.s32 %s47, %s51
    %p53 = scmp.eq.s32.totalorder %s52, 0
    %s55 = sadd.s32 %s54, 1
    %s56 = scalar_select %p53, %s54, %s55
    %p59 = pneg %p53
    %p60 = scmp.eq.s32.totalorder %s24, 3
    %p61 = por %p59, %p60
    %p62 = scmp.ne.s32.totalorder %s54, %s57
    %p63 = scmp.eq.s32.totalorder %s24, 0
    %p64 = por %p62, %p63
    %p65 = scmp.ne.s32.totalorder %s54, %s57
    %p66 = scmp.eq.s32.totalorder %s29, 3
    %p67 = por %p65, %p66
    %p68 = scmp.ne.s32.totalorder %s57, %s58
    %p69 = scmp.eq.s32.totalorder %s29, 0
    %p70 = por %p68, %p69
    %p71 = scmp.ne.s32.totalorder %s57, %s58
    %p72 = scmp.eq.s32.totalorder %s30, 3
    %p73 = por %p71, %p72
    %p75 = scmp.ne.s32.totalorder %s58, %s74
    %p76 = scmp.eq.s32.totalorder %s30, 0
    %p77 = por %p75, %p76
    %s78 = ssub.s32 %s31, %s43
    %p79 = scmp.eq.s32.totalorder %s78, 0
    %s81 = sadd.s32 %s80, 1
    %s82 = scalar_select %p79, %s80, %s81
    %p85 = pneg %p79
    %p86 = scmp.eq.s32.totalorder %s24, 3
    %p87 = por %p85, %p86
    %p88 = scmp.ne.s32.totalorder %s80, %s83
    %p89 = scmp.eq.s32.totalorder %s24, 0
    %p90 = por %p88, %p89
    %p91 = scmp.ne.s32.totalorder %s80, %s83
    %p92 = scmp.eq.s32.totalorder %s29, 3
    %p93 = por %p91, %p92
    %p94 = scmp.ne.s32.totalorder %s83, %s84
    %p95 = scmp.eq.s32.totalorder %s29, 0
    %p96 = por %p94, %p95
    %p97 = scmp.ne.s32.totalorder %s83, %s84
    %p98 = scmp.eq.s32.totalorder %s30, 3
    %p99 = por %p97, %p98
    %p101 = scmp.ne.s32.totalorder %s84, %s100
    %p102 = scmp.eq.s32.totalorder %s30, 0
    %p103 = por %p101, %p102
    %p104 = scmp.le.s32.totalorder 1, %s24
    %p105 = scmp.lt.s32.totalorder %s24, 5
    %p106 = pnand %p104, %p105
    %p107 = pneg %p106
    // Predicated region
    $region9: #{global_max_pool.1} parent=5 // pred_check
      _
    $region10: #{global_max_pool.1} parent=5 // pred_check_branch
      %109 = sbr.rel (%p106) target = $region12
    $region11: #{global_max_pool.1} parent=5 // pred_region
      %s110 = ssub.s32 %s24, 1
    $region12: #{global_max_pool.1} parent=5 // pred_fallthru
      _
    %p111 = scmp.lt.s32.totalorder %s24, 4
    // Predicated region
    $region13: #{global_max_pool.1} parent=5 // pred_check
      %p112 = pneg %p111
    $region14: #{global_max_pool.1} parent=5 // pred_check_branch
      %114 = sbr.rel (%p112) target = $region16
    $region15: #{global_max_pool.1} parent=5 // pred_region
      // Predicated region
      $region17: #{global_max_pool.1} parent=15 // pred_check
        %p115 = pneg %p64
      $region18: #{global_max_pool.1} parent=15 // pred_check_branch
        %117 = sbr.rel (%p115) target = $region20
      $region19: #{global_max_pool.1} parent=15 // pred_region
        %s118 = smul.u32 %s31, 2
        %s119 = sadd.s32 %s118, %s32
        %p120 = scmp.lt.s32.totalorder %s119, 3
        %s121 = scalar_select %p120, %s119, 3
        %s122 = smul.u32 16, %s121
        %p123 = scmp.lt.s32.totalorder %s122, 63
        %s124 = scalar_select %p123, %s122, 63
        %s125 = smul.addr %s124, 8
        %s126 = scalar_lea.vmem %s3, %s125
        %s127 = smul.u32 %s31, 2
        %s128 = sadd.s32 %s127, %s32
        %p129 = scmp.lt.s32.totalorder %s128, 3
        %s130 = scalar_select %p129, %s128, 3
        %s131 = smul.u32 16, %s130
      $region20: #{global_max_pool.1} parent=15 // pred_fallthru
        _
    $region16: #{global_max_pool.1} parent=5 // pred_fallthru
      _
    %p132 = scmp.le.s32.totalorder 1, %s24
    %p133 = scmp.lt.s32.totalorder %s24, 5
    %p134 = pnand %p132, %p133
    %p135 = pneg %p134
    // Predicated region
    $region21: #{global_max_pool.1} parent=5 // pred_check
      _
    $region22: #{global_max_pool.1} parent=5 // pred_check_branch
      %137 = sbr.rel (%p134) target = $region24
    $region23: #{global_max_pool.1} parent=5 // pred_region
      %s138 = ssub.s32 %s24, 1
      %s139 = smul.u32 %s33, 2
      %s140 = sadd.s32 %s139, %s34
      %p141 = scmp.lt.s32.totalorder %s140, 3
      %s142 = scalar_select %p141, %s140, 3
      %s143 = smul.u32 16, %s142
      %p144 = scmp.lt.s32.totalorder %s143, 63
      %s145 = scalar_select %p144, %s143, 63
      %s146 = smul.addr %s145, 8
      %s147 = scalar_lea.vmem %s3, %s146
      %p148 = pneg %p70
      %p149 = pneg %p67
      %p150 = pneg %p96
      %p151 = pneg %p93
      %p152 = scmp.lt.s32.totalorder %s33, 1
      %s153 = scalar_select %p152, %s33, 1
      %s154 = smul.addr %s153, 4
      %s155 = scalar_lea.vmem %s4, %s154
      %s156 = smul.u32 %s33, 2
      %s157 = sadd.s32 %s156, %s34
      %p158 = scmp.lt.s32.totalorder %s157, 3
      %s159 = scalar_select %p158, %s157, 3
      %s160 = smul.u32 16, %s159
      %p161 = scmp.lt.s32.totalorder %s160, 63
      %s162 = scalar_select %p161, %s160, 63
      %s163 = smul.addr %s162, 8
      %s164 = scalar_lea.vmem %s3, %s163
      %s165 = smul.u32 %s33, 2
      %s166 = sadd.s32 %s165, %s34
      %p167 = scmp.lt.s32.totalorder %s166, 3
      %s168 = scalar_select %p167, %s166, 3
      %s169 = smul.u32 16, %s168
      %p170 = scmp.lt.s32.totalorder %s33, 1
      %s171 = scalar_select %p170, %s33, 1
      %s172 = smul.addr %s171, 4
      %s173 = scalar_lea.vmem %s4, %s172
      %p174 = scmp.eq.s32.totalorder %s34, 0
      // Predicated region
      $region25: #{global_max_pool.1} parent=23 // pred_check
        %p175 = pneg %p174
      $region26: #{global_max_pool.1} parent=23 // pred_check_branch
        %177 = sbr.rel (%p175) target = $region28
      $region27: #{global_max_pool.1} parent=23 // pred_region
        %vm178 = vcmask 785408
        %179 = vst.msk [vmem:[#allocation2] sm:$0xff] %vm178, -inf
        %180 = vst.msk [vmem:[#allocation2 + $0x8] sm:$0xff] %vm178, -inf
        %181 = vst.msk [vmem:[#allocation2 + $0x10] sm:$0xff] %vm178, -inf
        %182 = vst.msk [vmem:[#allocation2 + $0x18] sm:$0xff] %vm178, -inf
      $region28: #{global_max_pool.1} parent=23 // pred_fallthru
        _
      %s183 = smul.u32 %s33, 2
      %s184 = sadd.s32 %s183, %s34
      %p185 = scmp.lt.s32.totalorder %s184, 3
      %s186 = scalar_select %p185, %s184, 3
      %s187 = smul.u32 %s186, 128
      %s188 = sld [smem:[#allocation5 + %s186]]
      %s189 = sld [smem:[#allocation6 + %s186]]
      %p190 = scmp.eq.s32.totalorder %s188, %s189
      %s191 = sadd.s32 %s187, 128
      %p192 = scmp.le.s32.totalorder %s191, 512
      %p193 = pnand %p190, %p192
      %p194 = pneg %p193
      // Predicated region
      $region29: #{global_max_pool.1} parent=23 // pred_check
        _
      $region30: #{global_max_pool.1} parent=23 // pred_check_branch
        %196 = sbr.rel (%p193) target = $region32
      $region31: #{global_max_pool.1} parent=23 // pred_region
        %v197 = vld [vmem:[%s164] sm:$0xff]
        %v198 = vld [vmem:[%s164 + $0x8] sm:$0xff]
        %v199 = vld [vmem:[%s164 + $0x10] sm:$0xff]
        %v200 = vld [vmem:[%s164 + $0x18] sm:$0xff]
        %v201 = vld [vmem:[%s164 + $0x20] sm:$0xff]
        %v202 = vld [vmem:[%s164 + $0x28] sm:$0xff]
        %v203 = vld [vmem:[%s164 + $0x30] sm:$0xff]
        %v204 = vld [vmem:[%s164 + $0x38] sm:$0xff]
        %v205 = vld [vmem:[%s164 + $0x40] sm:$0xff]
        %v206 = vld [vmem:[%s164 + $0x48] sm:$0xff]
        %v207 = vld [vmem:[%s164 + $0x50] sm:$0xff]
        %v208 = vld [vmem:[%s164 + $0x58] sm:$0xff]
        %v209 = vld [vmem:[%s164 + $0x60] sm:$0xff]
        %v210 = vld [vmem:[%s164 + $0x68] sm:$0xff]
        %v211 = vld [vmem:[%s164 + $0x70] sm:$0xff]
        %v212 = vld [vmem:[%s164 + $0x78] sm:$0xff]
        %v213 = vmax.f32 %v197, %v205
        %v214 = vmax.f32 %v198, %v206
        %v215 = vmax.f32 %v199, %v207
        %v216 = vmax.f32 %v200, %v208
        %v217 = vmax.f32 %v201, %v209
        %v218 = vmax.f32 %v202, %v210
        %v219 = vmax.f32 %v203, %v211
        %v220 = vmax.f32 %v204, %v212
        %v221 = vmax.f32 %v213, %v217
        %v222 = vmax.f32 %v214, %v218
        %v223 = vmax.f32 %v215, %v219
        %v224 = vmax.f32 %v216, %v220
        %v225 = vmax.f32 %v221, %v223
        %v226 = vmax.f32 %v222, %v224
        %v227 = vmax.f32 %v225, %v226
        %s228 = smul.u32 %s188, 8
        %s229 = scalar_lea.vmem [#allocation2], %s228
        %v230 = vld [vmem:[%s229] sm:$0xff]
        %v231 = vmax.f32 %v230, %v227
        %vm232 = vcmask 785408
        %233 = vst.msk [vmem:[%s229] sm:$0xff] %vm232, %v231
      $region32: #{global_max_pool.1} parent=23 // pred_fallthru
        _
      %p234 = pneg %p194
      // Predicated region
      $region33: #{global_max_pool.1} parent=23 // pred_check
        _
      $region34: #{global_max_pool.1} parent=23 // pred_check_branch
        %236 = sbr.rel (%p194) target = $region36
      $region35: #{global_max_pool.1} parent=23 // pred_region
        %v237 = vlaneseq
        %v238 = vshrl.u32 %v237, 7
        %v239 = vadd.s32 %v238, 8
        %v240 = vadd.s32 %v238, 16
        %v241 = vadd.s32 %v238, 24
        %v242 = vadd.s32 %v238, 32
        %v243 = vadd.s32 %v238, 40
        %v244 = vadd.s32 %v238, 48
        %v245 = vadd.s32 %v238, 56
        %v246 = vadd.s32 %v238, 64
        %v247 = vadd.s32 %v238, 72
        %v248 = vadd.s32 %v238, 80
        %v249 = vadd.s32 %v238, 88
        %v250 = vadd.s32 %v238, 96
        %v251 = vadd.s32 %v238, 104
        %v252 = vadd.s32 %v238, 112
        %v253 = vadd.s32 %v238, 120
        %v254 = vstv %s187
        %v255 = vadd.s32 %v254, %v238
        %v256 = vadd.s32 %v254, %v239
        %v257 = vadd.s32 %v254, %v240
        %v258 = vadd.s32 %v254, %v241
        %v259 = vadd.s32 %v254, %v242
        %v260 = vadd.s32 %v254, %v243
        %v261 = vadd.s32 %v254, %v244
        %v262 = vadd.s32 %v254, %v245
        %v263 = vadd.s32 %v254, %v246
        %v264 = vadd.s32 %v254, %v247
        %v265 = vadd.s32 %v254, %v248
        %v266 = vadd.s32 %v254, %v249
        %v267 = vadd.s32 %v254, %v250
        %v268 = vadd.s32 %v254, %v251
        %v269 = vadd.s32 %v254, %v252
        %v270 = vadd.s32 %v254, %v253
        %v271 = vld [vmem:[%s164] sm:$0xff]
        %v272 = vld [vmem:[%s164 + $0x8] sm:$0xff]
        %v273 = vld [vmem:[%s164 + $0x10] sm:$0xff]
        %v274 = vld [vmem:[%s164 + $0x18] sm:$0xff]
        %v275 = vld [vmem:[%s164 + $0x20] sm:$0xff]
        %v276 = vld [vmem:[%s164 + $0x28] sm:$0xff]
        %v277 = vld [vmem:[%s164 + $0x30] sm:$0xff]
        %v278 = vld [vmem:[%s164 + $0x38] sm:$0xff]
        %v279 = vld [vmem:[%s164 + $0x40] sm:$0xff]
        %v280 = vld [vmem:[%s164 + $0x48] sm:$0xff]
        %v281 = vld [vmem:[%s164 + $0x50] sm:$0xff]
        %v282 = vld [vmem:[%s164 + $0x58] sm:$0xff]
        %v283 = vld [vmem:[%s164 + $0x60] sm:$0xff]
        %v284 = vld [vmem:[%s164 + $0x68] sm:$0xff]
        %v285 = vld [vmem:[%s164 + $0x70] sm:$0xff]
        %v286 = vld [vmem:[%s164 + $0x78] sm:$0xff]
        %s287 = sadd.s32 %s189, 1
        // While loop
        $region37: #{global_max_pool.1} parent=35 // loop_pre_header
          _
        $region38: #{global_max_pool.1} parent=35 // loop_header
          %s289 = sphi %s188, %s291
          %p290 = scmp.ge.s32.totalorder %s289, %s287
        $region39: #{global_max_pool.1} parent=35 // loop_header_branch
          %293 = sbr.rel (%p290) target = $region43
        $region40: #{global_max_pool.1} parent=35 // loop_body
          %s294 = sld [smem:[#allocation4 + %s289]]
          %s295 = sadd.s32 %s289, 1
          %s296 = sld [smem:[#allocation4 + %s295]]
          %v297 = vstv %s294
          %vm298 = vcmp.ge.s32.totalorder %v255, %v297
          %vm299 = vcmp.ge.s32.totalorder %v256, %v297
          %vm300 = vcmp.ge.s32.totalorder %v257, %v297
          %vm301 = vcmp.ge.s32.totalorder %v258, %v297
          %vm302 = vcmp.ge.s32.totalorder %v259, %v297
          %vm303 = vcmp.ge.s32.totalorder %v260, %v297
          %vm304 = vcmp.ge.s32.totalorder %v261, %v297
          %vm305 = vcmp.ge.s32.totalorder %v262, %v297
          %vm306 = vcmp.ge.s32.totalorder %v263, %v297
          %vm307 = vcmp.ge.s32.totalorder %v264, %v297
          %vm308 = vcmp.ge.s32.totalorder %v265, %v297
          %vm309 = vcmp.ge.s32.totalorder %v266, %v297
          %vm310 = vcmp.ge.s32.totalorder %v267, %v297
          %vm311 = vcmp.ge.s32.totalorder %v268, %v297
          %vm312 = vcmp.ge.s32.totalorder %v269, %v297
          %vm313 = vcmp.ge.s32.totalorder %v270, %v297
          %v314 = vstv %s296
          %vm315 = vcmp.lt.s32.totalorder %v255, %v314
          %vm316 = vcmp.lt.s32.totalorder %v256, %v314
          %vm317 = vcmp.lt.s32.totalorder %v257, %v314
          %vm318 = vcmp.lt.s32.totalorder %v258, %v314
          %vm319 = vcmp.lt.s32.totalorder %v259, %v314
          %vm320 = vcmp.lt.s32.totalorder %v260, %v314
          %vm321 = vcmp.lt.s32.totalorder %v261, %v314
          %vm322 = vcmp.lt.s32.totalorder %v262, %v314
          %vm323 = vcmp.lt.s32.totalorder %v263, %v314
          %vm324 = vcmp.lt.s32.totalorder %v264, %v314
          %vm325 = vcmp.lt.s32.totalorder %v265, %v314
          %vm326 = vcmp.lt.s32.totalorder %v266, %v314
          %vm327 = vcmp.lt.s32.totalorder %v267, %v314
          %vm328 = vcmp.lt.s32.totalorder %v268, %v314
          %vm329 = vcmp.lt.s32.totalorder %v269, %v314
          %vm330 = vcmp.lt.s32.totalorder %v270, %v314
          %vm331 = vmand %vm298, %vm315
          %vm332 = vmand %vm299, %vm316
          %vm333 = vmand %vm300, %vm317
          %vm334 = vmand %vm301, %vm318
          %vm335 = vmand %vm302, %vm319
          %vm336 = vmand %vm303, %vm320
          %vm337 = vmand %vm304, %vm321
          %vm338 = vmand %vm305, %vm322
          %vm339 = vmand %vm306, %vm323
          %vm340 = vmand %vm307, %vm324
          %vm341 = vmand %vm308, %vm325
          %vm342 = vmand %vm309, %vm326
          %vm343 = vmand %vm310, %vm327
          %vm344 = vmand %vm311, %vm328
          %vm345 = vmand %vm312, %vm329
          %vm346 = vmand %vm313, %vm330
          %v347 = vsel %vm331, 1, 0
          %v348 = vsel %vm332, 1, 0
          %v349 = vsel %vm333, 1, 0
          %v350 = vsel %vm334, 1, 0
          %v351 = vsel %vm335, 1, 0
          %v352 = vsel %vm336, 1, 0
          %v353 = vsel %vm337, 1, 0
          %v354 = vsel %vm338, 1, 0
          %v355 = vsel %vm339, 1, 0
          %v356 = vsel %vm340, 1, 0
          %v357 = vsel %vm341, 1, 0
          %v358 = vsel %vm342, 1, 0
          %v359 = vsel %vm343, 1, 0
          %v360 = vsel %vm344, 1, 0
          %v361 = vsel %vm345, 1, 0
          %v362 = vsel %vm346, 1, 0
          %vm363 = vcmp.eq.s32.totalorder %v347, 1
          %vm364 = vcmp.eq.s32.totalorder %v348, 1
          %vm365 = vcmp.eq.s32.totalorder %v349, 1
          %vm366 = vcmp.eq.s32.totalorder %v350, 1
          %vm367 = vcmp.eq.s32.totalorder %v351, 1
          %vm368 = vcmp.eq.s32.totalorder %v352, 1
          %vm369 = vcmp.eq.s32.totalorder %v353, 1
          %vm370 = vcmp.eq.s32.totalorder %v354, 1
          %vm371 = vcmp.eq.s32.totalorder %v355, 1
          %vm372 = vcmp.eq.s32.totalorder %v356, 1
          %vm373 = vcmp.eq.s32.totalorder %v357, 1
          %vm374 = vcmp.eq.s32.totalorder %v358, 1
          %vm375 = vcmp.eq.s32.totalorder %v359, 1
          %vm376 = vcmp.eq.s32.totalorder %v360, 1
          %vm377 = vcmp.eq.s32.totalorder %v361, 1
          %vm378 = vcmp.eq.s32.totalorder %v362, 1
          %v379 = vsel %vm363, %v271, -inf
          %v380 = vsel %vm364, %v272, -inf
          %v381 = vsel %vm365, %v273, -inf
          %v382 = vsel %vm366, %v274, -inf
          %v383 = vsel %vm367, %v275, -inf
          %v384 = vsel %vm368, %v276, -inf
          %v385 = vsel %vm369, %v277, -inf
          %v386 = vsel %vm370, %v278, -inf
          %v387 = vsel %vm371, %v279, -inf
          %v388 = vsel %vm372, %v280, -inf
          %v389 = vsel %vm373, %v281, -inf
          %v390 = vsel %vm374, %v282, -inf
          %v391 = vsel %vm375, %v283, -inf
          %v392 = vsel %vm376, %v284, -inf
          %v393 = vsel %vm377, %v285, -inf
          %v394 = vsel %vm378, %v286, -inf
          %v395 = vmax.f32 %v379, %v387
          %v396 = vmax.f32 %v380, %v388
          %v397 = vmax.f32 %v381, %v389
          %v398 = vmax.f32 %v382, %v390
          %v399 = vmax.f32 %v383, %v391
          %v400 = vmax.f32 %v384, %v392
          %v401 = vmax.f32 %v385, %v393
          %v402 = vmax.f32 %v386, %v394
          %v403 = vmax.f32 %v395, %v399
          %v404 = vmax.f32 %v396, %v400
          %v405 = vmax.f32 %v397, %v401
          %v406 = vmax.f32 %v398, %v402
          %v407 = vmax.f32 %v403, %v405
          %v408 = vmax.f32 %v404, %v406
          %v409 = vmax.f32 %v407, %v408
          %s410 = smul.u32 %s289, 8
          %s411 = scalar_lea.vmem [#allocation2], %s410
          %v412 = vld [vmem:[%s411] sm:$0xff]
          %v413 = vmax.f32 %v412, %v409
          %vm414 = vcmask 785408
          %415 = vst.msk [vmem:[%s411] sm:$0xff] %vm414, %v413
        $region41: #{global_max_pool.1} parent=35 // loop_footer
          %s291 = sadd.s32 %s289, 1
        $region42: #{global_max_pool.1} parent=35 // loop_footer_branch
          %288 = sbr.rel target = $region38
        $region43: #{global_max_pool.1} parent=35 // loop_exit
          _
      $region36: #{global_max_pool.1} parent=23 // pred_fallthru
        _
      %p416 = scmp.eq.s32.totalorder %s34, 1
      // Predicated region
      $region44: #{global_max_pool.1} parent=23 // pred_check
        %p417 = pneg %p416
      $region45: #{global_max_pool.1} parent=23 // pred_check_branch
        %419 = sbr.rel (%p417) target = $region47
      $region46: #{global_max_pool.1} parent=23 // pred_region
        %v420 = vld [vmem:[#allocation2] sm:$0xff]
        %v421 = vld [vmem:[#allocation2 + $0x8] sm:$0xff]
        %v422 = vld [vmem:[#allocation2 + $0x10] sm:$0xff]
        %v423 = vld [vmem:[#allocation2 + $0x18] sm:$0xff]
        %vm424 = vcmask 785408
        %v425 = vsel %vm424, %v420, -inf
        %v426 = vrot.slane %v425, 4
        %v427 = vmax.f32 %v425, %v426
        %v428 = vrot.slane %v427, 2
        %v429 = vmax.f32 %v427, %v428
        %v430 = vrot.slane %v429, 1
        %v431 = vmax.f32 %v429, %v430
        %v432 = vsel %vm424, %v421, -inf
        %v433 = vrot.slane %v432, 4
        %v434 = vmax.f32 %v432, %v433
        %v435 = vrot.slane %v434, 2
        %v436 = vmax.f32 %v434, %v435
        %v437 = vrot.slane %v436, 1
        %v438 = vmax.f32 %v436, %v437
        %v439 = vsel %vm424, %v422, -inf
        %v440 = vrot.slane %v439, 4
        %v441 = vmax.f32 %v439, %v440
        %v442 = vrot.slane %v441, 2
        %v443 = vmax.f32 %v441, %v442
        %v444 = vrot.slane %v443, 1
        %v445 = vmax.f32 %v443, %v444
        %v446 = vsel %vm424, %v423, -inf
        %v447 = vrot.slane %v446, 4
        %v448 = vmax.f32 %v446, %v447
        %v449 = vrot.slane %v448, 2
        %v450 = vmax.f32 %v448, %v449
        %v451 = vrot.slane %v450, 1
        %v452 = vmax.f32 %v450, %v451
        %vm457 = vcmask 1041409
        %v458 = vsel %vm457, %v438, %v431
        %vm459 = vcmask 1042434
        %v460 = vsel %vm459, %v445, %v458
        %vm461 = vcmask 1043459
        %v462 = vsel %vm461, %v452, %v460
        %vm464 = vcmask 781312
        %465 = vst.msk [vmem:[%s173] sm:$0xf] %vm464, %v462
      $region47: #{global_max_pool.1} parent=23 // pred_fallthru
        _
      %p466 = scmp.lt.s32.totalorder %s33, 1
      %s467 = scalar_select %p466, %s33, 1
      %s468 = smul.addr %s467, 4
      %s469 = scalar_lea.vmem %s4, %s468
      // Predicated region
      $region48: #{global_max_pool.1} parent=23 // pred_check
        %p470 = pneg %p93
      $region49: #{global_max_pool.1} parent=23 // pred_check_branch
        %472 = sbr.rel (%p470) target = $region51
      $region50: #{global_max_pool.1} parent=23 // pred_region
        _
      $region51: #{global_max_pool.1} parent=23 // pred_fallthru
        _
    $region24: #{global_max_pool.1} parent=5 // pred_fallthru
      _
    %p473 = scmp.le.s32.totalorder 2, %s24
    // Predicated region
    $region52: #{global_max_pool.1} parent=5 // pred_check
      %p474 = pneg %p473
    $region53: #{global_max_pool.1} parent=5 // pred_check_branch
      %476 = sbr.rel (%p474) target = $region55
    $region54: #{global_max_pool.1} parent=5 // pred_region
      %s477 = ssub.s32 %s24, 2
      // Predicated region
      $region56: #{global_max_pool.1} parent=54 // pred_check
        %p478 = pneg %p99
      $region57: #{global_max_pool.1} parent=54 // pred_check_branch
        %480 = sbr.rel (%p478) target = $region59
      $region58: #{global_max_pool.1} parent=54 // pred_region
        %p481 = scmp.lt.s32.totalorder %s35, 1
        %s482 = scalar_select %p481, %s35, 1
        %s483 = smul.addr %s482, 4
        %s484 = scalar_lea.vmem %s4, %s483
      $region59: #{global_max_pool.1} parent=54 // pred_fallthru
        _
    $region55: #{global_max_pool.1} parent=5 // pred_fallthru
      _
  $region6: #{global_max_pool.1} parent=0 // loop_footer
    %s28 = sadd.s32 1, %s24
  $region7: #{global_max_pool.1} parent=0 // loop_footer_branch
    %23 = sbr.rel target = $region3
  $region8: #{global_max_pool.1} parent=0 // loop_exit
    _

</llo_original>
